<compile_context>
chip_gen: v6e
topology: v6e:2x2x1
jax: 0.10.0
libtpu: 0.0.40
codegen_flags: <defaults>
</compile_context>

<pallas_src>
import functools

import jax
import jax.numpy as jnp
from jax.experimental import pallas as pl
from jax.experimental.pallas import tpu as pltpu

# Hyper-parameters of the module (args.margin / args.alpha / args.beta),
# fixed deterministically in-script.
MARGIN = 0.5
ALPHA = 2.0
BETA = 50.0
_SAFE_LOG_EPS = 1e-8
_NORM_EPS = 1e-12


def _ms_loss_kernel(e_ref, out_ref, *, directed: bool, n_valid: int,
                    tile_n: int, mask_tail: bool):
    """One tile: fused-normalized per-sample cosine sims + MS loss (lane-dense).

    e_ref:   (3, tile_n, D) block of the group-major embeddings (native dtype).
    out_ref: (1, tile_n) per-sample losses for this tile (f32).
    """
    # Transpose in the native (possibly bf16) dtype first -> XLU moves half the
    # bytes -- then cast to f32 for the math. (D, tile_n) orientation keeps all
    # per-sample scalars lane-dense.
    e0 = e_ref[0].T.astype(jnp.float32)          # (D, tile_n)
    e1 = e_ref[1].T.astype(jnp.float32)          # (D, tile_n)
    e2 = e_ref[2].T.astype(jnp.float32)          # (D, tile_n)

    # Fused L2 normalization: self/cross dot products + rsqrt scaling.
    # s01 = d01 * rsqrt(q0+eps) * rsqrt(q1+eps) matches normalizing each vector
    # by rsqrt(sum(x*x)+eps) exactly (up to FP associativity).
    q0 = jnp.sum(e0 * e0, axis=0, keepdims=True)     # (1, tile_n)
    q1 = jnp.sum(e1 * e1, axis=0, keepdims=True)
    q2 = jnp.sum(e2 * e2, axis=0, keepdims=True)
    r0 = jax.lax.rsqrt(q0 + _NORM_EPS)
    r1 = jax.lax.rsqrt(q1 + _NORM_EPS)
    r2 = jax.lax.rsqrt(q2 + _NORM_EPS)

    s01 = jnp.sum(e0 * e1, axis=0, keepdims=True) * (r0 * r1)   # anchor-positive
    s02 = jnp.sum(e0 * e2, axis=0, keepdims=True) * (r0 * r2)   # anchor-negative

    def pull(s_ap):
        return jnp.log(1.0 + jnp.exp(ALPHA * (MARGIN - s_ap)) + _SAFE_LOG_EPS) / ALPHA

    def push(s_an):
        return jnp.log(1.0 + jnp.exp(BETA * (s_an - MARGIN)) + _SAFE_LOG_EPS) / BETA

    # TODO(synk): if a profile ever shows an exp/log tail, reshape the
    # (1, tile_n) scalars to (8, tile_n//8) here; today it hides under DMA.
    if directed:
        per_sample = pull(s01) + push(s02)
    else:
        s12 = jnp.sum(e1 * e2, axis=0, keepdims=True) * (r1 * r2)
        # (ms(s01, s02) + ms(s01, s12)) / 2 ; the pull(s01) term is shared.
        per_sample = pull(s01) + 0.5 * (push(s02) + push(s12))

    if mask_tail:
        col = jax.lax.broadcasted_iota(jnp.int32, (1, tile_n), 1)
        valid = (pl.program_id(0) * tile_n + col) < n_valid
        per_sample = jnp.where(valid, per_sample, 0.0)

    out_ref[...] = per_sample


def _vmem_capacity_bytes() -> int:
    """Physical VMEM of the current chip; conservative (v7x) fallback."""
    try:
        return int(pltpu.get_tpu_info().vmem_capacity_bytes)
    except Exception:  # no TPU info available at trace time
        return 64 * 1024 * 1024


def _estimate_peak_vmem(tile_n: int, d: int, itemsize: int) -> int:
    """Double-buffered input block + f32 transposed copies / products + output."""
    in_block = 3 * tile_n * d * itemsize
    f32_block = tile_n * d * 4
    return 2 * in_block + 6 * f32_block + 4 * tile_n * 4


def _pick_tile_n(n: int, d: int, itemsize: int) -> int:
    """VMEM-aware tile size: as large as the chip allows, multiple of 128,
    and never a single grid step for large N (keeps both v7x cores busy)."""
    budget = _vmem_capacity_bytes() // 2        # headroom for everything else
    per_row = 2 * 3 * d * itemsize + 6 * d * 4  # matches _estimate_peak_vmem
    cap = (budget // per_row) // 128 * 128
    cap = max(128, min(8192, cap))
    if n <= 512 and n <= cap:
        return n                                # tiny problem: one full block
    # Aim for >= ~4 grid steps so the "parallel" axis shards across cores and
    # the BlockSpec pipeline has something to overlap.
    quarter = -(-n // 4)                        # ceil(n / 4)
    quarter = -(-quarter // 128) * 128          # round up to a 128 multiple
    return min(cap, max(128, quarter))


def multi_similarity_loss(embeddings, *, directed: bool, tile_n: int | None = None):
    """embeddings: [3*N, D] float array (group-major, any float dtype).
    Returns the scalar MultiSimilarity loss."""
    total, d = embeddings.shape
    if total % 3 != 0:
        raise ValueError("batch must contain 3 equal-sized groups")
    n = total // 3
    itemsize = embeddings.dtype.itemsize

    if tile_n is None:
        tile_n = _pick_tile_n(n, d, itemsize)
    if not (tile_n == n or tile_n % 128 == 0):
        raise ValueError("tile_n must equal N or be a multiple of 128")

    num_tiles = int(pl.cdiv(n, tile_n))
    n_pad = num_tiles * tile_n
    mask_tail = n_pad != n

    # Free metadata reshape: no HBM copy, group offsets folded into the block.
    e3 = embeddings.reshape(3, n, d)

    kernel = functools.partial(
        _ms_loss_kernel, directed=directed, n_valid=n, tile_n=tile_n,
        mask_tail=mask_tail)

    vmem_cap = _vmem_capacity_bytes()
    peak = _estimate_peak_vmem(tile_n, d, itemsize) + (4 << 20)
    vmem_limit = int(min(max(peak, 16 << 20), max(vmem_cap - (8 << 20), 32 << 20)))

    cost = pl.CostEstimate(
        flops=int(n * (12 * d + 40)),
        transcendentals=int(9 * n),
        bytes_accessed=int(3 * n * d * itemsize + n_pad * 4),
    )

    # TODO(synk): sweep pipeline_mode=pl.Buffered(3) on the input spec on v7x
    # if a profile shows exposed DMA gaps between grid steps.
    per_sample = pl.pallas_call(
        kernel,
        out_shape=jax.ShapeDtypeStruct((1, n_pad), jnp.float32),
        grid_spec=pltpu.PrefetchScalarGridSpec(
            num_scalar_prefetch=0,
            grid=(num_tiles,),
            in_specs=[pl.BlockSpec((3, tile_n, d), lambda i: (0, i, 0))],
            out_specs=pl.BlockSpec((1, tile_n), lambda i: (0, i)),
        ),
        compiler_params=pltpu.CompilerParams(
            dimension_semantics=("parallel",),
            vmem_limit_bytes=vmem_limit,
        ),
        cost_estimate=cost,
    )(e3)

    # Tiny final reduction (n_pad floats) outside the kernel; padded tail is
    # zeroed in-kernel, so divide by the true N (matches torch.mean).
    return jnp.sum(per_sample) / jnp.float32(n)


def _reference_loss(embeddings, directed: bool):
    """Pure-JAX reference mirroring the PyTorch forward."""
    n = embeddings.shape[0] // 3
    e = embeddings.astype(jnp.float32)
    e = e / jnp.sqrt(jnp.sum(e * e, axis=-1, keepdims=True) + _NORM_EPS)
    e0, e1, e2 = e[:n], e[n:2 * n], e[2 * n:]
    s01 = jnp.sum(e0 * e1, axis=-1)
    s02 = jnp.sum(e0 * e2, axis=-1)

    def ms(s_ap, s_an):
        sp = jnp.exp(ALPHA * (MARGIN - s_ap))
        sn = jnp.exp(BETA * (s_an - MARGIN))
        pull = jnp.log(1.0 + sp + _SAFE_LOG_EPS) / ALPHA
        push = jnp.log(1.0 + sn + _SAFE_LOG_EPS) / BETA
        return jnp.mean(pull + push)

    if directed:
        return ms(s01, s02)
    s12 = jnp.sum(e1 * e2, axis=-1)
    return (ms(s01, s02) + ms(s01, s12)) / 2.0


if __name__ == "__main__":
    key = jax.random.PRNGKey(0)
    N, D = 256, 128                       # 3 groups of 256 samples, dim 128
    emb_f32 = jax.random.normal(key, (3 * N, D), dtype=jnp.float32)

    # f32 inputs, single-tile and multi-tile grids, both loss variants.
    for directed in (True, False):
        for tile_n in (None, 128):
            loss = multi_similarity_loss(emb_f32, directed=directed, tile_n=tile_n)
            loss = jax.block_until_ready(loss)
            ref = _reference_loss(emb_f32, directed)
            assert jnp.allclose(loss, ref, rtol=1e-5, atol=1e-5), (
                directed, tile_n, loss, ref)

    # Ragged N (not a multiple of the tile): exercises cdiv grid + tail masking.
    N2 = 200
    emb_ragged = jax.random.normal(jax.random.PRNGKey(1), (3 * N2, D),
                                   dtype=jnp.float32)
    for directed in (True, False):
        loss = jax.block_until_ready(
            multi_similarity_loss(emb_ragged, directed=directed, tile_n=128))
        ref = _reference_loss(emb_ragged, directed)
        assert jnp.allclose(loss, ref, rtol=1e-5, atol=1e-5), (directed, loss, ref)

    # Native bf16 inputs (halves HBM traffic; loss math stays f32 in-kernel).
    emb_bf16 = emb_f32.astype(jnp.bfloat16)
    loss = jax.block_until_ready(multi_similarity_loss(emb_bf16, directed=True))
    ref = _reference_loss(emb_bf16, True)
    assert jnp.allclose(loss, ref, rtol=1e-4, atol=1e-4), (loss, ref)

    print("KERNEL_OK")
</pallas_src>

<mosaic_0001>
module attributes {stable_mosaic.version = 11 : i64} {
  func.func @_ms_loss_kernel(%arg0: i32, %arg1: memref<3x256x128xf32, #tpu.memory_space<vmem>>, %arg2: memref<1x256xf32, #tpu.memory_space<vmem>>) attributes {dimension_semantics = [#tpu.dimension_semantics<parallel>], iteration_bounds = array<i64: 1>, scalar_prefetch = 0 : i64, scratch_operands = 0 : i64, tpu.core_type = #tpu.core_type<tc>, window_params = [{transform_indices = @transform_0, window_bounds = array<i64: 3, 256, 128>}, {transform_indices = @transform_1, window_bounds = array<i64: 1, 256>}]} {
    %c0 = arith.constant 0 : index
    %c0_0 = arith.constant 0 : index
    %c0_1 = arith.constant 0 : index
    %0 = vector.load %arg1[%c0, %c0_0, %c0_1] : memref<3x256x128xf32, #tpu.memory_space<vmem>>, vector<1x256x128xf32>
    %1 = vector.shape_cast %0 : vector<1x256x128xf32> to vector<256x128xf32>
    %2 = tpu.transpose %1, [1, 0] : vector<256x128xf32> -> vector<128x256xf32>
    %c1 = arith.constant 1 : index
    %c0_2 = arith.constant 0 : index
    %c0_3 = arith.constant 0 : index
    %3 = vector.load %arg1[%c1, %c0_2, %c0_3] : memref<3x256x128xf32, #tpu.memory_space<vmem>>, vector<1x256x128xf32>
    %4 = vector.shape_cast %3 : vector<1x256x128xf32> to vector<256x128xf32>
    %5 = tpu.transpose %4, [1, 0] : vector<256x128xf32> -> vector<128x256xf32>
    %c2 = arith.constant 2 : index
    %c0_4 = arith.constant 0 : index
    %c0_5 = arith.constant 0 : index
    %6 = vector.load %arg1[%c2, %c0_4, %c0_5] : memref<3x256x128xf32, #tpu.memory_space<vmem>>, vector<1x256x128xf32>
    %7 = vector.shape_cast %6 : vector<1x256x128xf32> to vector<256x128xf32>
    %8 = tpu.transpose %7, [1, 0] : vector<256x128xf32> -> vector<128x256xf32>
    %9 = arith.mulf %2, %2 : vector<128x256xf32>
    %cst = arith.constant dense<0.000000e+00> : vector<256xf32>
    %10 = vector.multi_reduction <add>, %9, %cst [0] : vector<128x256xf32> to vector<256xf32>
    %11 = vector.shape_cast %10 : vector<256xf32> to vector<1x256xf32>
    %12 = arith.mulf %5, %5 : vector<128x256xf32>
    %cst_6 = arith.constant dense<0.000000e+00> : vector<256xf32>
    %13 = vector.multi_reduction <add>, %12, %cst_6 [0] : vector<128x256xf32> to vector<256xf32>
    %14 = vector.shape_cast %13 : vector<256xf32> to vector<1x256xf32>
    %15 = arith.mulf %8, %8 : vector<128x256xf32>
    %cst_7 = arith.constant dense<0.000000e+00> : vector<256xf32>
    %16 = vector.multi_reduction <add>, %15, %cst_7 [0] : vector<128x256xf32> to vector<256xf32>
    %17 = vector.shape_cast %16 : vector<256xf32> to vector<1x256xf32>
    %cst_8 = arith.constant 9.99999996E-13 : f32
    %18 = vector.broadcast %cst_8 : f32 to vector<1x256xf32>
    %19 = arith.addf %11, %18 : vector<1x256xf32>
    %20 = math.rsqrt %19 : vector<1x256xf32>
    %cst_9 = arith.constant 9.99999996E-13 : f32
    %21 = vector.broadcast %cst_9 : f32 to vector<1x256xf32>
    %22 = arith.addf %14, %21 : vector<1x256xf32>
    %23 = math.rsqrt %22 : vector<1x256xf32>
    %cst_10 = arith.constant 9.99999996E-13 : f32
    %24 = vector.broadcast %cst_10 : f32 to vector<1x256xf32>
    %25 = arith.addf %17, %24 : vector<1x256xf32>
    %26 = math.rsqrt %25 : vector<1x256xf32>
    %27 = arith.mulf %2, %5 : vector<128x256xf32>
    %cst_11 = arith.constant dense<0.000000e+00> : vector<256xf32>
    %28 = vector.multi_reduction <add>, %27, %cst_11 [0] : vector<128x256xf32> to vector<256xf32>
    %29 = vector.shape_cast %28 : vector<256xf32> to vector<1x256xf32>
    %30 = arith.mulf %20, %23 : vector<1x256xf32>
    %31 = arith.mulf %29, %30 : vector<1x256xf32>
    %32 = arith.mulf %2, %8 : vector<128x256xf32>
    %cst_12 = arith.constant dense<0.000000e+00> : vector<256xf32>
    %33 = vector.multi_reduction <add>, %32, %cst_12 [0] : vector<128x256xf32> to vector<256xf32>
    %34 = vector.shape_cast %33 : vector<256xf32> to vector<1x256xf32>
    %35 = arith.mulf %20, %26 : vector<1x256xf32>
    %36 = arith.mulf %34, %35 : vector<1x256xf32>
    %cst_13 = arith.constant 5.000000e-01 : f32
    %37 = vector.broadcast %cst_13 : f32 to vector<1x256xf32>
    %38 = arith.subf %37, %31 : vector<1x256xf32>
    %cst_14 = arith.constant 2.000000e+00 : f32
    %39 = vector.broadcast %cst_14 : f32 to vector<1x256xf32>
    %40 = arith.mulf %39, %38 : vector<1x256xf32>
    %41 = math.exp %40 : vector<1x256xf32>
    %cst_15 = arith.constant 1.000000e+00 : f32
    %42 = vector.broadcast %cst_15 : f32 to vector<1x256xf32>
    %43 = arith.addf %42, %41 : vector<1x256xf32>
    %cst_16 = arith.constant 9.99999993E-9 : f32
    %44 = vector.broadcast %cst_16 : f32 to vector<1x256xf32>
    %45 = arith.addf %43, %44 : vector<1x256xf32>
    %46 = math.log %45 : vector<1x256xf32>
    %cst_17 = arith.constant 2.000000e+00 : f32
    %47 = vector.broadcast %cst_17 : f32 to vector<1x256xf32>
    %48 = arith.divf %46, %47 : vector<1x256xf32>
    %cst_18 = arith.constant 5.000000e-01 : f32
    %49 = vector.broadcast %cst_18 : f32 to vector<1x256xf32>
    %50 = arith.subf %36, %49 : vector<1x256xf32>
    %cst_19 = arith.constant 5.000000e+01 : f32
    %51 = vector.broadcast %cst_19 : f32 to vector<1x256xf32>
    %52 = arith.mulf %51, %50 : vector<1x256xf32>
    %53 = math.exp %52 : vector<1x256xf32>
    %cst_20 = arith.constant 1.000000e+00 : f32
    %54 = vector.broadcast %cst_20 : f32 to vector<1x256xf32>
    %55 = arith.addf %54, %53 : vector<1x256xf32>
    %cst_21 = arith.constant 9.99999993E-9 : f32
    %56 = vector.broadcast %cst_21 : f32 to vector<1x256xf32>
    %57 = arith.addf %55, %56 : vector<1x256xf32>
    %58 = math.log %57 : vector<1x256xf32>
    %cst_22 = arith.constant 5.000000e+01 : f32
    %59 = vector.broadcast %cst_22 : f32 to vector<1x256xf32>
    %60 = arith.divf %58, %59 : vector<1x256xf32>
    %61 = arith.addf %48, %60 : vector<1x256xf32>
    %c0_23 = arith.constant 0 : index
    %c0_24 = arith.constant 0 : index
    %62 = vector.load %arg2[%c0_23, %c0_24] : memref<1x256xf32, #tpu.memory_space<vmem>>, vector<1x256xf32>
    tpu.vector_store %arg2[%c0_23, %c0_24], %61 {strides = array<i32>} : memref<1x256xf32, #tpu.memory_space<vmem>>, vector<1x256xf32>,
    return
  }
  func.func @transform_0(%arg0: i32) -> (i32, i32, i32) {
    %c0_i32 = arith.constant 0 : i32
    %c0_i32_0 = arith.constant 0 : i32
    %c0_i32_1 = arith.constant 0 : i32
    return %c0_i32, %arg0, %c0_i32_0 : i32, i32, i32
  }
  func.func @transform_1(%arg0: i32) -> (i32, i32) {
    %c0_i32 = arith.constant 0 : i32
    %c0_i32_0 = arith.constant 0 : i32
    return %c0_i32, %arg0 : i32, i32
  }
}

</mosaic_0001>

<llo_original>
// kernel: tpu_custom_call.1
$region0: #{tpu_custom_call.1}
  #allocation0 [shape = 'u32[]', space=smem, size = 0x4, offset = 0x4, fixed_abs, tag = 'smem constant byte address 0x4 - core index']
  #allocation1 [shape = 'u32[144,128]{1,0:T(1,128)}', space=vmem, size = 0x12000, scoped, tag = 'internal scratch']
  %s0 = inlined_call_operand.hbm [shape: f32[3,256,128], index: 0, kind: input, shape index: {}]
  %s1 = inlined_call_operand.hbm [shape: f32[1,256], index: 1, kind: output, shape index: {}]
  %s2 = sld [smem:[#allocation0]]
  $region18: #{tpu_custom_call.1} parent=0
    _
  %s4 = ssub.s32 1, %s2
  %s5 = scalar_select 0, %s4, %s2
  $region1: #{tpu_custom_call.1} parent=0
    #allocation2 [shape = 'u8[393216]{0}', space=vmem, size = 0x60000, scoped, tag = 'input window, operand 0, single buffered']
    #allocation3 [shape = 's32[1]{0}', space=sflag, size = 0x4, scoped, tag = 'scoped memory for tpu_custom_call.1']
    #allocation4 [shape = 's32[1]{0}', space=sflag, size = 0x4, scoped, tag = 'scoped memory for tpu_custom_call.1']
    #allocation5 [shape = 'u8[1024]{0}', space=vmem, size = 0x400, scoped, tag = 'output window, operand 0, single buffered']
    %6 = vsyncpa [#allocation3], 0
    %7 = vsyncpa [#allocation4], 0
    // Predicated region
    $region2: #{tpu_custom_call.1} parent=1 // pred_check
      _
    $region3: #{tpu_custom_call.1} parent=1 // pred_check_branch
      %9 = sbr.rel (0) target = $region5
    $region4: #{tpu_custom_call.1} parent=1 // pred_region
      %s11 = ssub.s32 12288, 12288
      %12 = vsyncadd [#allocation3], %s11
      %s13 = sshll.u32 [#allocation2], 4
      %s14 = int_to_ptr.vmem [resolvable:$true] %s13
      %19 = dma.hbm_to_vmem [thread:$0]  %s0, 12288, %s14, [#allocation3], 128, 128, 8
    $region5: #{tpu_custom_call.1} parent=1 // pred_fallthru
      _
    // Predicated region
    $region6: #{tpu_custom_call.1} parent=1 // pred_check
      _
    $region7: #{tpu_custom_call.1} parent=1 // pred_check_branch
      %21 = sbr.rel (0) target = $region9
    $region8: #{tpu_custom_call.1} parent=1 // pred_region
      %22 = dma.done [#allocation3], 12288
    $region9: #{tpu_custom_call.1} parent=1 // pred_fallthru
      _
    %v23 = vld [vmem:[#allocation2] sm:$0xff]
    %v24 = vld [vmem:[#allocation2 + $0x8] sm:$0xff]
    %v25 = vld [vmem:[#allocation2 + $0x10] sm:$0xff]
    %v26 = vld [vmem:[#allocation2 + $0x18] sm:$0xff]
    %v27 = vld [vmem:[#allocation2 + $0x20] sm:$0xff]
    %v28 = vld [vmem:[#allocation2 + $0x28] sm:$0xff]
    %v29 = vld [vmem:[#allocation2 + $0x30] sm:$0xff]
    %v30 = vld [vmem:[#allocation2 + $0x38] sm:$0xff]
    %v31 = vld [vmem:[#allocation2 + $0x40] sm:$0xff]
    %v32 = vld [vmem:[#allocation2 + $0x48] sm:$0xff]
    %v33 = vld [vmem:[#allocation2 + $0x50] sm:$0xff]
    %v34 = vld [vmem:[#allocation2 + $0x58] sm:$0xff]
    %v35 = vld [vmem:[#allocation2 + $0x60] sm:$0xff]
    %v36 = vld [vmem:[#allocation2 + $0x68] sm:$0xff]
    %v37 = vld [vmem:[#allocation2 + $0x70] sm:$0xff]
    %v38 = vld [vmem:[#allocation2 + $0x78] sm:$0xff]
    %v39 = vld [vmem:[#allocation2 + $0x80] sm:$0xff]
    %v40 = vld [vmem:[#allocation2 + $0x88] sm:$0xff]
    %v41 = vld [vmem:[#allocation2 + $0x90] sm:$0xff]
    %v42 = vld [vmem:[#allocation2 + $0x98] sm:$0xff]
    %v43 = vld [vmem:[#allocation2 + $0xa0] sm:$0xff]
    %v44 = vld [vmem:[#allocation2 + $0xa8] sm:$0xff]
    %v45 = vld [vmem:[#allocation2 + $0xb0] sm:$0xff]
    %v46 = vld [vmem:[#allocation2 + $0xb8] sm:$0xff]
    %v47 = vld [vmem:[#allocation2 + $0xc0] sm:$0xff]
    %v48 = vld [vmem:[#allocation2 + $0xc8] sm:$0xff]
    %v49 = vld [vmem:[#allocation2 + $0xd0] sm:$0xff]
    %v50 = vld [vmem:[#allocation2 + $0xd8] sm:$0xff]
    %v51 = vld [vmem:[#allocation2 + $0xe0] sm:$0xff]
    %v52 = vld [vmem:[#allocation2 + $0xe8] sm:$0xff]
    %v53 = vld [vmem:[#allocation2 + $0xf0] sm:$0xff]
    %v54 = vld [vmem:[#allocation2 + $0xf8] sm:$0xff]
    %55 = vxpose.xlu0.b32.start [1/16] %v23, 128
    %56 = vxpose.xlu0.b32.cont [2/16] %v24, 128
    %57 = vxpose.xlu0.b32.cont [3/16] %v25, 128
    %58 = vxpose.xlu0.b32.cont [4/16] %v26, 128
    %59 = vxpose.xlu0.b32.cont [5/16] %v27, 128
    %60 = vxpose.xlu0.b32.cont [6/16] %v28, 128
    %61 = vxpose.xlu0.b32.cont [7/16] %v29, 128
    %62 = vxpose.xlu0.b32.cont [8/16] %v30, 128
    %63 = vxpose.xlu0.b32.cont [9/16] %v31, 128
    %64 = vxpose.xlu0.b32.cont [10/16] %v32, 128
    %65 = vxpose.xlu0.b32.cont [11/16] %v33, 128
    %66 = vxpose.xlu0.b32.cont [12/16] %v34, 128
    %67 = vxpose.xlu0.b32.cont [13/16] %v35, 128
    %68 = vxpose.xlu0.b32.cont [14/16] %v36, 128
    %69 = vxpose.xlu0.b32.cont [15/16] %v37, 128
    %70 = vxpose.xlu0.b32.end [16/16] %v38, 128
    %v71 = vpop.trf.xlu0
    %v72 = vpop.trf.xlu0
    %v73 = vpop.trf.xlu0
    %v74 = vpop.trf.xlu0
    %v75 = vpop.trf.xlu0
    %v76 = vpop.trf.xlu0
    %v77 = vpop.trf.xlu0
    %v78 = vpop.trf.xlu0
    %v79 = vpop.trf.xlu0
    %v80 = vpop.trf.xlu0
    %v81 = vpop.trf.xlu0
    %v82 = vpop.trf.xlu0
    %v83 = vpop.trf.xlu0
    %v84 = vpop.trf.xlu0
    %v85 = vpop.trf.xlu0
    %v86 = vpop.trf.xlu0
    %87 = vxpose.xlu0.b32.start [1/16] %v39, 128
    %88 = vxpose.xlu0.b32.cont [2/16] %v40, 128
    %89 = vxpose.xlu0.b32.cont [3/16] %v41, 128
    %90 = vxpose.xlu0.b32.cont [4/16] %v42, 128
    %91 = vxpose.xlu0.b32.cont [5/16] %v43, 128
    %92 = vxpose.xlu0.b32.cont [6/16] %v44, 128
    %93 = vxpose.xlu0.b32.cont [7/16] %v45, 128
    %94 = vxpose.xlu0.b32.cont [8/16] %v46, 128
    %95 = vxpose.xlu0.b32.cont [9/16] %v47, 128
    %96 = vxpose.xlu0.b32.cont [10/16] %v48, 128
    %97 = vxpose.xlu0.b32.cont [11/16] %v49, 128
    %98 = vxpose.xlu0.b32.cont [12/16] %v50, 128
    %99 = vxpose.xlu0.b32.cont [13/16] %v51, 128
    %100 = vxpose.xlu0.b32.cont [14/16] %v52, 128
    %101 = vxpose.xlu0.b32.cont [15/16] %v53, 128
    %102 = vxpose.xlu0.b32.end [16/16] %v54, 128
    %v103 = vpop.trf.xlu0
    %v104 = vpop.trf.xlu0
    %v105 = vpop.trf.xlu0
    %v106 = vpop.trf.xlu0
    %v107 = vpop.trf.xlu0
    %v108 = vpop.trf.xlu0
    %v109 = vpop.trf.xlu0
    %v110 = vpop.trf.xlu0
    %v111 = vpop.trf.xlu0
    %v112 = vpop.trf.xlu0
    %v113 = vpop.trf.xlu0
    %v114 = vpop.trf.xlu0
    %v115 = vpop.trf.xlu0
    %v116 = vpop.trf.xlu0
    %v117 = vpop.trf.xlu0
    %v118 = vpop.trf.xlu0
    %s119 = scalar_lea.vmem [#allocation2], 256
    %v120 = vld [vmem:[%s119] sm:$0xff]
    %v121 = vld [vmem:[%s119 + $0x8] sm:$0xff]
    %v122 = vld [vmem:[%s119 + $0x10] sm:$0xff]
    %v123 = vld [vmem:[%s119 + $0x18] sm:$0xff]
    %v124 = vld [vmem:[%s119 + $0x20] sm:$0xff]
    %v125 = vld [vmem:[%s119 + $0x28] sm:$0xff]
    %v126 = vld [vmem:[%s119 + $0x30] sm:$0xff]
    %v127 = vld [vmem:[%s119 + $0x38] sm:$0xff]
    %v128 = vld [vmem:[%s119 + $0x40] sm:$0xff]
    %v129 = vld [vmem:[%s119 + $0x48] sm:$0xff]
    %v130 = vld [vmem:[%s119 + $0x50] sm:$0xff]
    %v131 = vld [vmem:[%s119 + $0x58] sm:$0xff]
    %v132 = vld [vmem:[%s119 + $0x60] sm:$0xff]
    %v133 = vld [vmem:[%s119 + $0x68] sm:$0xff]
    %v134 = vld [vmem:[%s119 + $0x70] sm:$0xff]
    %v135 = vld [vmem:[%s119 + $0x78] sm:$0xff]
    %v136 = vld [vmem:[%s119 + $0x80] sm:$0xff]
    %v137 = vld [vmem:[%s119 + $0x88] sm:$0xff]
    %v138 = vld [vmem:[%s119 + $0x90] sm:$0xff]
    %v139 = vld [vmem:[%s119 + $0x98] sm:$0xff]
    %v140 = vld [vmem:[%s119 + $0xa0] sm:$0xff]
    %v141 = vld [vmem:[%s119 + $0xa8] sm:$0xff]
    %v142 = vld [vmem:[%s119 + $0xb0] sm:$0xff]
    %v143 = vld [vmem:[%s119 + $0xb8] sm:$0xff]
    %v144 = vld [vmem:[%s119 + $0xc0] sm:$0xff]
    %v145 = vld [vmem:[%s119 + $0xc8] sm:$0xff]
    %v146 = vld [vmem:[%s119 + $0xd0] sm:$0xff]
    %v147 = vld [vmem:[%s119 + $0xd8] sm:$0xff]
    %v148 = vld [vmem:[%s119 + $0xe0] sm:$0xff]
    %v149 = vld [vmem:[%s119 + $0xe8] sm:$0xff]
    %v150 = vld [vmem:[%s119 + $0xf0] sm:$0xff]
    %v151 = vld [vmem:[%s119 + $0xf8] sm:$0xff]
    %152 = vxpose.xlu0.b32.start [1/16] %v120, 128
    %153 = vxpose.xlu0.b32.cont [2/16] %v121, 128
    %154 = vxpose.xlu0.b32.cont [3/16] %v122, 128
    %155 = vxpose.xlu0.b32.cont [4/16] %v123, 128
    %156 = vxpose.xlu0.b32.cont [5/16] %v124, 128
    %157 = vxpose.xlu0.b32.cont [6/16] %v125, 128
    %158 = vxpose.xlu0.b32.cont [7/16] %v126, 128
    %159 = vxpose.xlu0.b32.cont [8/16] %v127, 128
    %160 = vxpose.xlu0.b32.cont [9/16] %v128, 128
    %161 = vxpose.xlu0.b32.cont [10/16] %v129, 128
    %162 = vxpose.xlu0.b32.cont [11/16] %v130, 128
    %163 = vxpose.xlu0.b32.cont [12/16] %v131, 128
    %164 = vxpose.xlu0.b32.cont [13/16] %v132, 128
    %165 = vxpose.xlu0.b32.cont [14/16] %v133, 128
    %166 = vxpose.xlu0.b32.cont [15/16] %v134, 128
    %167 = vxpose.xlu0.b32.end [16/16] %v135, 128
    %v168 = vpop.trf.xlu0
    %v169 = vpop.trf.xlu0
    %v170 = vpop.trf.xlu0
    %v171 = vpop.trf.xlu0
    %v172 = vpop.trf.xlu0
    %v173 = vpop.trf.xlu0
    %v174 = vpop.trf.xlu0
    %v175 = vpop.trf.xlu0
    %v176 = vpop.trf.xlu0
    %v177 = vpop.trf.xlu0
    %v178 = vpop.trf.xlu0
    %v179 = vpop.trf.xlu0
    %v180 = vpop.trf.xlu0
    %v181 = vpop.trf.xlu0
    %v182 = vpop.trf.xlu0
    %v183 = vpop.trf.xlu0
    %184 = vxpose.xlu0.b32.start [1/16] %v136, 128
    %185 = vxpose.xlu0.b32.cont [2/16] %v137, 128
    %186 = vxpose.xlu0.b32.cont [3/16] %v138, 128
    %187 = vxpose.xlu0.b32.cont [4/16] %v139, 128
    %188 = vxpose.xlu0.b32.cont [5/16] %v140, 128
    %189 = vxpose.xlu0.b32.cont [6/16] %v141, 128
    %190 = vxpose.xlu0.b32.cont [7/16] %v142, 128
    %191 = vxpose.xlu0.b32.cont [8/16] %v143, 128
    %192 = vxpose.xlu0.b32.cont [9/16] %v144, 128
    %193 = vxpose.xlu0.b32.cont [10/16] %v145, 128
    %194 = vxpose.xlu0.b32.cont [11/16] %v146, 128
    %195 = vxpose.xlu0.b32.cont [12/16] %v147, 128
    %196 = vxpose.xlu0.b32.cont [13/16] %v148, 128
    %197 = vxpose.xlu0.b32.cont [14/16] %v149, 128
    %198 = vxpose.xlu0.b32.cont [15/16] %v150, 128
    %199 = vxpose.xlu0.b32.end [16/16] %v151, 128
    %v200 = vpop.trf.xlu0
    %v201 = vpop.trf.xlu0
    %v202 = vpop.trf.xlu0
    %v203 = vpop.trf.xlu0
    %v204 = vpop.trf.xlu0
    %v205 = vpop.trf.xlu0
    %v206 = vpop.trf.xlu0
    %v207 = vpop.trf.xlu0
    %v208 = vpop.trf.xlu0
    %v209 = vpop.trf.xlu0
    %v210 = vpop.trf.xlu0
    %v211 = vpop.trf.xlu0
    %v212 = vpop.trf.xlu0
    %v213 = vpop.trf.xlu0
    %v214 = vpop.trf.xlu0
    %v215 = vpop.trf.xlu0
    %s216 = scalar_lea.vmem [#allocation2], 512
    %v217 = vld [vmem:[%s216] sm:$0xff]
    %v218 = vld [vmem:[%s216 + $0x8] sm:$0xff]
    %v219 = vld [vmem:[%s216 + $0x10] sm:$0xff]
    %v220 = vld [vmem:[%s216 + $0x18] sm:$0xff]
    %v221 = vld [vmem:[%s216 + $0x20] sm:$0xff]
    %v222 = vld [vmem:[%s216 + $0x28] sm:$0xff]
    %v223 = vld [vmem:[%s216 + $0x30] sm:$0xff]
    %v224 = vld [vmem:[%s216 + $0x38] sm:$0xff]
    %v225 = vld [vmem:[%s216 + $0x40] sm:$0xff]
    %v226 = vld [vmem:[%s216 + $0x48] sm:$0xff]
    %v227 = vld [vmem:[%s216 + $0x50] sm:$0xff]
    %v228 = vld [vmem:[%s216 + $0x58] sm:$0xff]
    %v229 = vld [vmem:[%s216 + $0x60] sm:$0xff]
    %v230 = vld [vmem:[%s216 + $0x68] sm:$0xff]
    %v231 = vld [vmem:[%s216 + $0x70] sm:$0xff]
    %v232 = vld [vmem:[%s216 + $0x78] sm:$0xff]
    %v233 = vld [vmem:[%s216 + $0x80] sm:$0xff]
    %v234 = vld [vmem:[%s216 + $0x88] sm:$0xff]
    %v235 = vld [vmem:[%s216 + $0x90] sm:$0xff]
    %v236 = vld [vmem:[%s216 + $0x98] sm:$0xff]
    %v237 = vld [vmem:[%s216 + $0xa0] sm:$0xff]
    %v238 = vld [vmem:[%s216 + $0xa8] sm:$0xff]
    %v239 = vld [vmem:[%s216 + $0xb0] sm:$0xff]
    %v240 = vld [vmem:[%s216 + $0xb8] sm:$0xff]
    %v241 = vld [vmem:[%s216 + $0xc0] sm:$0xff]
    %v242 = vld [vmem:[%s216 + $0xc8] sm:$0xff]
    %v243 = vld [vmem:[%s216 + $0xd0] sm:$0xff]
    %v244 = vld [vmem:[%s216 + $0xd8] sm:$0xff]
    %v245 = vld [vmem:[%s216 + $0xe0] sm:$0xff]
    %v246 = vld [vmem:[%s216 + $0xe8] sm:$0xff]
    %v247 = vld [vmem:[%s216 + $0xf0] sm:$0xff]
    %v248 = vld [vmem:[%s216 + $0xf8] sm:$0xff]
    %249 = vxpose.xlu0.b32.start [1/16] %v217, 128
    %250 = vxpose.xlu0.b32.cont [2/16] %v218, 128
    %251 = vxpose.xlu0.b32.cont [3/16] %v219, 128
    %252 = vxpose.xlu0.b32.cont [4/16] %v220, 128
    %253 = vxpose.xlu0.b32.cont [5/16] %v221, 128
    %254 = vxpose.xlu0.b32.cont [6/16] %v222, 128
    %255 = vxpose.xlu0.b32.cont [7/16] %v223, 128
    %256 = vxpose.xlu0.b32.cont [8/16] %v224, 128
    %257 = vxpose.xlu0.b32.cont [9/16] %v225, 128
    %258 = vxpose.xlu0.b32.cont [10/16] %v226, 128
    %259 = vxpose.xlu0.b32.cont [11/16] %v227, 128
    %260 = vxpose.xlu0.b32.cont [12/16] %v228, 128
    %261 = vxpose.xlu0.b32.cont [13/16] %v229, 128
    %262 = vxpose.xlu0.b32.cont [14/16] %v230, 128
    %263 = vxpose.xlu0.b32.cont [15/16] %v231, 128
    %264 = vxpose.xlu0.b32.end [16/16] %v232, 128
    %v265 = vpop.trf.xlu0
    %v266 = vpop.trf.xlu0
    %v267 = vpop.trf.xlu0
    %v268 = vpop.trf.xlu0
    %v269 = vpop.trf.xlu0
    %v270 = vpop.trf.xlu0
    %v271 = vpop.trf.xlu0
    %v272 = vpop.trf.xlu0
    %v273 = vpop.trf.xlu0
    %v274 = vpop.trf.xlu0
    %v275 = vpop.trf.xlu0
    %v276 = vpop.trf.xlu0
    %v277 = vpop.trf.xlu0
    %v278 = vpop.trf.xlu0
    %v279 = vpop.trf.xlu0
    %v280 = vpop.trf.xlu0
    %281 = vxpose.xlu0.b32.start [1/16] %v233, 128
    %282 = vxpose.xlu0.b32.cont [2/16] %v234, 128
    %283 = vxpose.xlu0.b32.cont [3/16] %v235, 128
    %284 = vxpose.xlu0.b32.cont [4/16] %v236, 128
    %285 = vxpose.xlu0.b32.cont [5/16] %v237, 128
    %286 = vxpose.xlu0.b32.cont [6/16] %v238, 128
    %287 = vxpose.xlu0.b32.cont [7/16] %v239, 128
    %288 = vxpose.xlu0.b32.cont [8/16] %v240, 128
    %289 = vxpose.xlu0.b32.cont [9/16] %v241, 128
    %290 = vxpose.xlu0.b32.cont [10/16] %v242, 128
    %291 = vxpose.xlu0.b32.cont [11/16] %v243, 128
    %292 = vxpose.xlu0.b32.cont [12/16] %v244, 128
    %293 = vxpose.xlu0.b32.cont [13/16] %v245, 128
    %294 = vxpose.xlu0.b32.cont [14/16] %v246, 128
    %295 = vxpose.xlu0.b32.cont [15/16] %v247, 128
    %296 = vxpose.xlu0.b32.end [16/16] %v248, 128
    %v297 = vpop.trf.xlu0
    %v298 = vpop.trf.xlu0
    %v299 = vpop.trf.xlu0
    %v300 = vpop.trf.xlu0
    %v301 = vpop.trf.xlu0
    %v302 = vpop.trf.xlu0
    %v303 = vpop.trf.xlu0
    %v304 = vpop.trf.xlu0
    %v305 = vpop.trf.xlu0
    %v306 = vpop.trf.xlu0
    %v307 = vpop.trf.xlu0
    %v308 = vpop.trf.xlu0
    %v309 = vpop.trf.xlu0
    %v310 = vpop.trf.xlu0
    %v311 = vpop.trf.xlu0
    %v312 = vpop.trf.xlu0
    %v313 = vmul.f32 %v71, %v71
    %v314 = vmul.f32 %v103, %v103
    %v315 = vmul.f32 %v72, %v72
    %v316 = vmul.f32 %v104, %v104
    %v317 = vmul.f32 %v73, %v73
    %v318 = vmul.f32 %v105, %v105
    %v319 = vmul.f32 %v74, %v74
    %v320 = vmul.f32 %v106, %v106
    %v321 = vmul.f32 %v75, %v75
    %v322 = vmul.f32 %v107, %v107
    %v323 = vmul.f32 %v76, %v76
    %v324 = vmul.f32 %v108, %v108
    %v325 = vmul.f32 %v77, %v77
    %v326 = vmul.f32 %v109, %v109
    %v327 = vmul.f32 %v78, %v78
    %v328 = vmul.f32 %v110, %v110
    %v329 = vmul.f32 %v79, %v79
    %v330 = vmul.f32 %v111, %v111
    %v331 = vmul.f32 %v80, %v80
    %v332 = vmul.f32 %v112, %v112
    %v333 = vmul.f32 %v81, %v81
    %v334 = vmul.f32 %v113, %v113
    %v335 = vmul.f32 %v82, %v82
    %v336 = vmul.f32 %v114, %v114
    %v337 = vmul.f32 %v83, %v83
    %v338 = vmul.f32 %v115, %v115
    %v339 = vmul.f32 %v84, %v84
    %v340 = vmul.f32 %v116, %v116
    %v341 = vmul.f32 %v85, %v85
    %v342 = vmul.f32 %v117, %v117
    %v343 = vmul.f32 %v86, %v86
    %v344 = vmul.f32 %v118, %v118
    %v345 = vadd.f32 %v313, %v315
    %v346 = vadd.f32 %v345, %v317
    %v347 = vadd.f32 %v346, %v319
    %v348 = vadd.f32 %v347, %v321
    %v349 = vadd.f32 %v348, %v323
    %v350 = vadd.f32 %v349, %v325
    %v351 = vadd.f32 %v350, %v327
    %v352 = vadd.f32 %v351, %v329
    %v353 = vadd.f32 %v352, %v331
    %v354 = vadd.f32 %v353, %v333
    %v355 = vadd.f32 %v354, %v335
    %v356 = vadd.f32 %v355, %v337
    %v357 = vadd.f32 %v356, %v339
    %v358 = vadd.f32 %v357, %v341
    %v359 = vadd.f32 %v358, %v343
    %v360 = vrot.slane %v359, 4
    %v361 = vadd.f32 %v359, %v360
    %v362 = vrot.slane %v361, 2
    %v363 = vadd.f32 %v361, %v362
    %v364 = vrot.slane %v363, 1
    %v365 = vadd.f32 %v363, %v364
    %v366 = vadd.f32 %v314, %v316
    %v367 = vadd.f32 %v366, %v318
    %v368 = vadd.f32 %v367, %v320
    %v369 = vadd.f32 %v368, %v322
    %v370 = vadd.f32 %v369, %v324
    %v371 = vadd.f32 %v370, %v326
    %v372 = vadd.f32 %v371, %v328
    %v373 = vadd.f32 %v372, %v330
    %v374 = vadd.f32 %v373, %v332
    %v375 = vadd.f32 %v374, %v334
    %v376 = vadd.f32 %v375, %v336
    %v377 = vadd.f32 %v376, %v338
    %v378 = vadd.f32 %v377, %v340
    %v379 = vadd.f32 %v378, %v342
    %v380 = vadd.f32 %v379, %v344
    %v381 = vrot.slane %v380, 4
    %v382 = vadd.f32 %v380, %v381
    %v383 = vrot.slane %v382, 2
    %v384 = vadd.f32 %v382, %v383
    %v385 = vrot.slane %v384, 1
    %v386 = vadd.f32 %v384, %v385
    %v387 = vmul.f32 %v168, %v168
    %v388 = vmul.f32 %v200, %v200
    %v389 = vmul.f32 %v169, %v169
    %v390 = vmul.f32 %v201, %v201
    %v391 = vmul.f32 %v170, %v170
    %v392 = vmul.f32 %v202, %v202
    %v393 = vmul.f32 %v171, %v171
    %v394 = vmul.f32 %v203, %v203
    %v395 = vmul.f32 %v172, %v172
    %v396 = vmul.f32 %v204, %v204
    %v397 = vmul.f32 %v173, %v173
    %v398 = vmul.f32 %v205, %v205
    %v399 = vmul.f32 %v174, %v174
    %v400 = vmul.f32 %v206, %v206
    %v401 = vmul.f32 %v175, %v175
    %v402 = vmul.f32 %v207, %v207
    %v403 = vmul.f32 %v176, %v176
    %v404 = vmul.f32 %v208, %v208
    %v405 = vmul.f32 %v177, %v177
    %v406 = vmul.f32 %v209, %v209
    %v407 = vmul.f32 %v178, %v178
    %v408 = vmul.f32 %v210, %v210
    %v409 = vmul.f32 %v179, %v179
    %v410 = vmul.f32 %v211, %v211
    %v411 = vmul.f32 %v180, %v180
    %v412 = vmul.f32 %v212, %v212
    %v413 = vmul.f32 %v181, %v181
    %v414 = vmul.f32 %v213, %v213
    %v415 = vmul.f32 %v182, %v182
    %v416 = vmul.f32 %v214, %v214
    %v417 = vmul.f32 %v183, %v183
    %v418 = vmul.f32 %v215, %v215
    %v419 = vadd.f32 %v387, %v389
    %v420 = vadd.f32 %v419, %v391
    %v421 = vadd.f32 %v420, %v393
    %v422 = vadd.f32 %v421, %v395
    %v423 = vadd.f32 %v422, %v397
    %v424 = vadd.f32 %v423, %v399
    %v425 = vadd.f32 %v424, %v401
    %v426 = vadd.f32 %v425, %v403
    %v427 = vadd.f32 %v426, %v405
    %v428 = vadd.f32 %v427, %v407
    %v429 = vadd.f32 %v428, %v409
    %v430 = vadd.f32 %v429, %v411
    %v431 = vadd.f32 %v430, %v413
    %v432 = vadd.f32 %v431, %v415
    %v433 = vadd.f32 %v432, %v417
    %v434 = vrot.slane %v433, 4
    %v435 = vadd.f32 %v433, %v434
    %v436 = vrot.slane %v435, 2
    %v437 = vadd.f32 %v435, %v436
    %v438 = vrot.slane %v437, 1
    %v439 = vadd.f32 %v437, %v438
    %v440 = vadd.f32 %v388, %v390
    %v441 = vadd.f32 %v440, %v392
    %v442 = vadd.f32 %v441, %v394
    %v443 = vadd.f32 %v442, %v396
    %v444 = vadd.f32 %v443, %v398
    %v445 = vadd.f32 %v444, %v400
    %v446 = vadd.f32 %v445, %v402
    %v447 = vadd.f32 %v446, %v404
    %v448 = vadd.f32 %v447, %v406
    %v449 = vadd.f32 %v448, %v408
    %v450 = vadd.f32 %v449, %v410
    %v451 = vadd.f32 %v450, %v412
    %v452 = vadd.f32 %v451, %v414
    %v453 = vadd.f32 %v452, %v416
    %v454 = vadd.f32 %v453, %v418
    %v455 = vrot.slane %v454, 4
    %v456 = vadd.f32 %v454, %v455
    %v457 = vrot.slane %v456, 2
    %v458 = vadd.f32 %v456, %v457
    %v459 = vrot.slane %v458, 1
    %v460 = vadd.f32 %v458, %v459
    %v461 = vmul.f32 %v265, %v265
    %v462 = vmul.f32 %v297, %v297
    %v463 = vmul.f32 %v266, %v266
    %v464 = vmul.f32 %v298, %v298
    %v465 = vmul.f32 %v267, %v267
    %v466 = vmul.f32 %v299, %v299
    %v467 = vmul.f32 %v268, %v268
    %v468 = vmul.f32 %v300, %v300
    %v469 = vmul.f32 %v269, %v269
    %v470 = vmul.f32 %v301, %v301
    %v471 = vmul.f32 %v270, %v270
    %v472 = vmul.f32 %v302, %v302
    %v473 = vmul.f32 %v271, %v271
    %v474 = vmul.f32 %v303, %v303
    %v475 = vmul.f32 %v272, %v272
    %v476 = vmul.f32 %v304, %v304
    %v477 = vmul.f32 %v273, %v273
    %v478 = vmul.f32 %v305, %v305
    %v479 = vmul.f32 %v274, %v274
    %v480 = vmul.f32 %v306, %v306
    %v481 = vmul.f32 %v275, %v275
    %v482 = vmul.f32 %v307, %v307
    %v483 = vmul.f32 %v276, %v276
    %v484 = vmul.f32 %v308, %v308
    %v485 = vmul.f32 %v277, %v277
    %v486 = vmul.f32 %v309, %v309
    %v487 = vmul.f32 %v278, %v278
    %v488 = vmul.f32 %v310, %v310
    %v489 = vmul.f32 %v279, %v279
    %v490 = vmul.f32 %v311, %v311
    %v491 = vmul.f32 %v280, %v280
    %v492 = vmul.f32 %v312, %v312
    %v493 = vadd.f32 %v461, %v463
    %v494 = vadd.f32 %v493, %v465
    %v495 = vadd.f32 %v494, %v467
    %v496 = vadd.f32 %v495, %v469
    %v497 = vadd.f32 %v496, %v471
    %v498 = vadd.f32 %v497, %v473
    %v499 = vadd.f32 %v498, %v475
    %v500 = vadd.f32 %v499, %v477
    %v501 = vadd.f32 %v500, %v479
    %v502 = vadd.f32 %v501, %v481
    %v503 = vadd.f32 %v502, %v483
    %v504 = vadd.f32 %v503, %v485
    %v505 = vadd.f32 %v504, %v487
    %v506 = vadd.f32 %v505, %v489
    %v507 = vadd.f32 %v506, %v491
    %v508 = vrot.slane %v507, 4
    %v509 = vadd.f32 %v507, %v508
    %v510 = vrot.slane %v509, 2
    %v511 = vadd.f32 %v509, %v510
    %v512 = vrot.slane %v511, 1
    %v513 = vadd.f32 %v511, %v512
    %v514 = vadd.f32 %v462, %v464
    %v515 = vadd.f32 %v514, %v466
    %v516 = vadd.f32 %v515, %v468
    %v517 = vadd.f32 %v516, %v470
    %v518 = vadd.f32 %v517, %v472
    %v519 = vadd.f32 %v518, %v474
    %v520 = vadd.f32 %v519, %v476
    %v521 = vadd.f32 %v520, %v478
    %v522 = vadd.f32 %v521, %v480
    %v523 = vadd.f32 %v522, %v482
    %v524 = vadd.f32 %v523, %v484
    %v525 = vadd.f32 %v524, %v486
    %v526 = vadd.f32 %v525, %v488
    %v527 = vadd.f32 %v526, %v490
    %v528 = vadd.f32 %v527, %v492
    %v529 = vrot.slane %v528, 4
    %v530 = vadd.f32 %v528, %v529
    %v531 = vrot.slane %v530, 2
    %v532 = vadd.f32 %v530, %v531
    %v533 = vrot.slane %v532, 1
    %v534 = vadd.f32 %v532, %v533
    %v535 = vadd.f32 %v365, 1e-12
    %v536 = vadd.f32 %v386, 1e-12
    %v537 = vrsqrt.pop %v535
    %v538 = vrsqrt.pop %v536
    %v539 = vadd.f32 %v439, 1e-12
    %v540 = vadd.f32 %v460, 1e-12
    %v541 = vrsqrt.pop %v539
    %v542 = vrsqrt.pop %v540
    %v543 = vadd.f32 %v513, 1e-12
    %v544 = vadd.f32 %v534, 1e-12
    %v545 = vrsqrt.pop %v543
    %v546 = vrsqrt.pop %v544
    %v547 = vmul.f32 %v71, %v168
    %v548 = vmul.f32 %v103, %v200
    %v549 = vmul.f32 %v72, %v169
    %v550 = vmul.f32 %v104, %v201
    %v551 = vmul.f32 %v73, %v170
    %v552 = vmul.f32 %v105, %v202
    %v553 = vmul.f32 %v74, %v171
    %v554 = vmul.f32 %v106, %v203
    %v555 = vmul.f32 %v75, %v172
    %v556 = vmul.f32 %v107, %v204
    %v557 = vmul.f32 %v76, %v173
    %v558 = vmul.f32 %v108, %v205
    %v559 = vmul.f32 %v77, %v174
    %v560 = vmul.f32 %v109, %v206
    %v561 = vmul.f32 %v78, %v175
    %v562 = vmul.f32 %v110, %v207
    %v563 = vmul.f32 %v79, %v176
    %v564 = vmul.f32 %v111, %v208
    %v565 = vmul.f32 %v80, %v177
    %v566 = vmul.f32 %v112, %v209
    %v567 = vmul.f32 %v81, %v178
    %v568 = vmul.f32 %v113, %v210
    %v569 = vmul.f32 %v82, %v179
    %v570 = vmul.f32 %v114, %v211
    %v571 = vmul.f32 %v83, %v180
    %v572 = vmul.f32 %v115, %v212
    %v573 = vmul.f32 %v84, %v181
    %v574 = vmul.f32 %v116, %v213
    %v575 = vmul.f32 %v85, %v182
    %v576 = vmul.f32 %v117, %v214
    %v577 = vmul.f32 %v86, %v183
    %v578 = vmul.f32 %v118, %v215
    %v579 = vadd.f32 %v547, %v549
    %v580 = vadd.f32 %v579, %v551
    %v581 = vadd.f32 %v580, %v553
    %v582 = vadd.f32 %v581, %v555
    %v583 = vadd.f32 %v582, %v557
    %v584 = vadd.f32 %v583, %v559
    %v585 = vadd.f32 %v584, %v561
    %v586 = vadd.f32 %v585, %v563
    %v587 = vadd.f32 %v586, %v565
    %v588 = vadd.f32 %v587, %v567
    %v589 = vadd.f32 %v588, %v569
    %v590 = vadd.f32 %v589, %v571
    %v591 = vadd.f32 %v590, %v573
    %v592 = vadd.f32 %v591, %v575
    %v593 = vadd.f32 %v592, %v577
    %v594 = vrot.slane %v593, 4
    %v595 = vadd.f32 %v593, %v594
    %v596 = vrot.slane %v595, 2
    %v597 = vadd.f32 %v595, %v596
    %v598 = vrot.slane %v597, 1
    %v599 = vadd.f32 %v597, %v598
    %v600 = vadd.f32 %v548, %v550
    %v601 = vadd.f32 %v600, %v552
    %v602 = vadd.f32 %v601, %v554
    %v603 = vadd.f32 %v602, %v556
    %v604 = vadd.f32 %v603, %v558
    %v605 = vadd.f32 %v604, %v560
    %v606 = vadd.f32 %v605, %v562
    %v607 = vadd.f32 %v606, %v564
    %v608 = vadd.f32 %v607, %v566
    %v609 = vadd.f32 %v608, %v568
    %v610 = vadd.f32 %v609, %v570
    %v611 = vadd.f32 %v610, %v572
    %v612 = vadd.f32 %v611, %v574
    %v613 = vadd.f32 %v612, %v576
    %v614 = vadd.f32 %v613, %v578
    %v615 = vrot.slane %v614, 4
    %v616 = vadd.f32 %v614, %v615
    %v617 = vrot.slane %v616, 2
    %v618 = vadd.f32 %v616, %v617
    %v619 = vrot.slane %v618, 1
    %v620 = vadd.f32 %v618, %v619
    %v621 = vmul.f32 %v537, %v541
    %v622 = vmul.f32 %v538, %v542
    %v623 = vmul.f32 %v599, %v621
    %v624 = vmul.f32 %v620, %v622
    %v625 = vmul.f32 %v71, %v265
    %v626 = vmul.f32 %v103, %v297
    %v627 = vmul.f32 %v72, %v266
    %v628 = vmul.f32 %v104, %v298
    %v629 = vmul.f32 %v73, %v267
    %v630 = vmul.f32 %v105, %v299
    %v631 = vmul.f32 %v74, %v268
    %v632 = vmul.f32 %v106, %v300
    %v633 = vmul.f32 %v75, %v269
    %v634 = vmul.f32 %v107, %v301
    %v635 = vmul.f32 %v76, %v270
    %v636 = vmul.f32 %v108, %v302
    %v637 = vmul.f32 %v77, %v271
    %v638 = vmul.f32 %v109, %v303
    %v639 = vmul.f32 %v78, %v272
    %v640 = vmul.f32 %v110, %v304
    %v641 = vmul.f32 %v79, %v273
    %v642 = vmul.f32 %v111, %v305
    %v643 = vmul.f32 %v80, %v274
    %v644 = vmul.f32 %v112, %v306
    %v645 = vmul.f32 %v81, %v275
    %v646 = vmul.f32 %v113, %v307
    %v647 = vmul.f32 %v82, %v276
    %v648 = vmul.f32 %v114, %v308
    %v649 = vmul.f32 %v83, %v277
    %v650 = vmul.f32 %v115, %v309
    %v651 = vmul.f32 %v84, %v278
    %v652 = vmul.f32 %v116, %v310
    %v653 = vmul.f32 %v85, %v279
    %v654 = vmul.f32 %v117, %v311
    %v655 = vmul.f32 %v86, %v280
    %v656 = vmul.f32 %v118, %v312
    %v657 = vadd.f32 %v625, %v627
    %v658 = vadd.f32 %v657, %v629
    %v659 = vadd.f32 %v658, %v631
    %v660 = vadd.f32 %v659, %v633
    %v661 = vadd.f32 %v660, %v635
    %v662 = vadd.f32 %v661, %v637
    %v663 = vadd.f32 %v662, %v639
    %v664 = vadd.f32 %v663, %v641
    %v665 = vadd.f32 %v664, %v643
    %v666 = vadd.f32 %v665, %v645
    %v667 = vadd.f32 %v666, %v647
    %v668 = vadd.f32 %v667, %v649
    %v669 = vadd.f32 %v668, %v651
    %v670 = vadd.f32 %v669, %v653
    %v671 = vadd.f32 %v670, %v655
    %v672 = vrot.slane %v671, 4
    %v673 = vadd.f32 %v671, %v672
    %v674 = vrot.slane %v673, 2
    %v675 = vadd.f32 %v673, %v674
    %v676 = vrot.slane %v675, 1
    %v677 = vadd.f32 %v675, %v676
    %v678 = vadd.f32 %v626, %v628
    %v679 = vadd.f32 %v678, %v630
    %v680 = vadd.f32 %v679, %v632
    %v681 = vadd.f32 %v680, %v634
    %v682 = vadd.f32 %v681, %v636
    %v683 = vadd.f32 %v682, %v638
    %v684 = vadd.f32 %v683, %v640
    %v685 = vadd.f32 %v684, %v642
    %v686 = vadd.f32 %v685, %v644
    %v687 = vadd.f32 %v686, %v646
    %v688 = vadd.f32 %v687, %v648
    %v689 = vadd.f32 %v688, %v650
    %v690 = vadd.f32 %v689, %v652
    %v691 = vadd.f32 %v690, %v654
    %v692 = vadd.f32 %v691, %v656
    %v693 = vrot.slane %v692, 4
    %v694 = vadd.f32 %v692, %v693
    %v695 = vrot.slane %v694, 2
    %v696 = vadd.f32 %v694, %v695
    %v697 = vrot.slane %v696, 1
    %v698 = vadd.f32 %v696, %v697
    %v699 = vmul.f32 %v537, %v545
    %v700 = vmul.f32 %v538, %v546
    %v701 = vmul.f32 %v677, %v699
    %v702 = vmul.f32 %v698, %v700
    %v703 = vsub.f32 0.5, %v623
    %v704 = vsub.f32 0.5, %v624
    %v705 = vmul.f32 %v703, 2.0
    %v706 = vmul.f32 %v704, 2.0
    %v707 = vmul.f32 %v705, 1.442695
    %v708 = vpow.pop %v707
    %v709 = vmul.f32 %v706, 1.442695
    %v710 = vpow.pop %v709
    %v711 = vadd.f32 %v708, 1.0
    %v712 = vadd.f32 %v710, 1.0
    %v713 = vadd.f32 %v711, 1e-08
    %v714 = vadd.f32 %v712, 1e-08
    %v715 = vlog2.pop %v713
    %v716 = vmul.f32 %v715, 0.6931472
    %v717 = vlog2.pop %v714
    %v718 = vmul.f32 %v717, 0.6931472
    %v719 = vrcp.pop 2.0
    %v720 = vmul.f32 %v716, %v719
    %v721 = vmul.f32 %v718, %v719
    %v722 = vsub.f32 %v701, 0.5
    %v723 = vsub.f32 %v702, 0.5
    %v724 = vmul.f32 %v722, 50.0
    %v725 = vmul.f32 %v723, 50.0
    %v726 = vmul.f32 %v724, 1.442695
    %v727 = vpow.pop %v726
    %v728 = vmul.f32 %v725, 1.442695
    %v729 = vpow.pop %v728
    %v730 = vadd.f32 %v727, 1.0
    %v731 = vadd.f32 %v729, 1.0
    %v732 = vadd.f32 %v730, 1e-08
    %v733 = vadd.f32 %v731, 1e-08
    %v734 = vlog2.pop %v732
    %v735 = vmul.f32 %v734, 0.6931472
    %v736 = vlog2.pop %v733
    %v737 = vmul.f32 %v736, 0.6931472
    %v738 = vrcp.pop 50.0
    %v739 = vmul.f32 %v735, %v738
    %v740 = vmul.f32 %v737, %v738
    %v741 = vadd.f32 %v720, %v739
    %v742 = vadd.f32 %v721, %v740
    %v745 = vcombine.low %v741, %v742
    %v747 = vunpack.c.l.s4 1966171168
    %v748 = vunpack.c.0.s8 %v747
    %v749 = vlaneseq
    %v750 = vshrl.u32 %v749, 7
    %v751 = vsub.s32 %v748, %v750
    %v752 = vrot.slane %v745, %v751
    %v754 = vunpack.c.l.s4 1966171168
    %v755 = vunpack.c.0.s8 %v754
    %v756 = vlaneseq
    %v757 = vshrl.u32 %v756, 7
    %v758 = vsub.s32 %v755, %v757
    %v759 = vrot.slane %v752, %v758
    %v761 = vlaneseq
    %vm762 = vcmp.ge.s32.totalorder %v761, 0
    %vm763 = vcmp.lt.s32.totalorder %v761, 256
    %vm764 = vmand %vm762, %vm763
    %765 = vst.msk [vmem:[#allocation5] sm:$0x3] %vm764, %v759
    // Predicated region
    $region10: #{tpu_custom_call.1} parent=1 // pred_check
      _
    $region11: #{tpu_custom_call.1} parent=1 // pred_check_branch
      %767 = sbr.rel (0) target = $region13
    $region12: #{tpu_custom_call.1} parent=1 // pred_region
      %s769 = ssub.s32 32, 32
      %770 = vsyncadd [#allocation4], %s769
      %s772 = sshll.u32 [#allocation5], 4
      %s773 = int_to_ptr.vmem [resolvable:$true] %s772
      %775 = dma.vmem_to_hbm [thread:$0]  %s773, 32, %s1, [#allocation4]
    $region13: #{tpu_custom_call.1} parent=1 // pred_fallthru
      _
    // Predicated region
    $region14: #{tpu_custom_call.1} parent=1 // pred_check
      _
    $region15: #{tpu_custom_call.1} parent=1 // pred_check_branch
      %777 = sbr.rel (0) target = $region17
    $region16: #{tpu_custom_call.1} parent=1 // pred_region
      %778 = dma.done [#allocation4], 32
    $region17: #{tpu_custom_call.1} parent=1 // pred_fallthru
      _
    %779 = vsyncpa [#allocation3], 1
    %780 = vsyncpa [#allocation4], 1

</llo_original>
